<compile_context>
chip_gen: v7x
topology: tpu7x:2x2x1
jax: 0.10.0
libtpu: 0.0.40
codegen_flags: <defaults>
</compile_context>

<pallas_src>
import functools

import jax
import jax.numpy as jnp
from jax.experimental import pallas as pl
from jax.experimental.pallas import tpu as pltpu

NN_SIZE = 32   # hidden_size in the PyTorch module
LANES = 128    # padded lane width for params / output


def _round_up(x, m):
    return (x + m - 1) // m * m


def _slab_layout(ni, width=LANES):
    """Row offsets of each packed block inside the param slab (all 8-aligned)."""
    r_w1 = 0
    r_w2 = _round_up(ni, 8)
    r_s = r_w2 + width
    r_b1 = r_s + width
    r_b2 = _round_up(r_b1 + 1, 8)
    rows = _round_up(r_b2 + 1, 8)
    return r_w1, r_w2, r_s, r_b1, r_b2, rows


# ----------------------------------------------------------------------------- kernel
def actor_critic_kernel(x_ref, p_ref, out_ref, *, ni, na, r_w2, r_s, r_b1, r_b2):
    W = p_ref.shape[-1]                                    # 128

    x = x_ref[...]                                         # [TB, ni]
    w1 = p_ref[0:ni, :]                                    # [ni, 128]  actor||critic layer-1
    w2 = p_ref[r_w2:r_w2 + W, :]                           # [128,128]  block layout layer-2
    shift = p_ref[r_s:r_s + W, :]                          # [128,128]  lane-shift permutation
    b1 = p_ref[r_b1:r_b1 + 1, :]                           # [1, 128]
    b2 = p_ref[r_b2:r_b2 + 1, :]                           # [1, 128]

    # one matmul + one tanh covers both heads' first layers (lanes >= 2H stay 0)
    h = jnp.tanh(jnp.dot(x, w1, preferred_element_type=jnp.float32) + b1)   # [TB, 128]
    # one matmul covers both second layers; z is already the padded output layout:
    # lanes [0:na) actor logits, [na:2na) critic q, rest 0
    z = jnp.dot(h, w2, preferred_element_type=jnp.float32) + b2             # [TB, 128]

    lane = jax.lax.broadcasted_iota(jnp.int32, z.shape, dimension=1)
    is_logit = lane < na
    neg = jnp.float32(-1e30)

    # masked softmax over lanes [0:na) (full-vreg selects, no narrow slices)
    m = jnp.max(jnp.where(is_logit, z, neg), axis=-1, keepdims=True)
    e = jnp.exp(jnp.where(is_logit, z - m, neg))           # 0 outside logit lanes
    policy = e * pl.reciprocal(jnp.sum(e, axis=-1, keepdims=True), approx=False)

    # align q (lanes na:2na) onto lanes 0:na with one MXU permutation, then reduce
    q_aligned = jnp.dot(z, shift, preferred_element_type=jnp.float32)       # [TB, 128]
    value = jnp.sum(policy * q_aligned, axis=-1, keepdims=True)             # [TB, 1]

    # single lane-dense store: [policy | q | value | zeros]
    out = jnp.where(is_logit, policy, z)
    out = jnp.where(lane == 2 * na, value, out)
    out_ref[...] = out.astype(out_ref.dtype)


# ----------------------------------------------------------------------------- packing / wrapper
def pack_params(p, width=LANES):
    """Pack all 8 Linear params (+ the lane-shift matrix) into one f32 slab [rows, 128]."""
    w1a, w1c = p["w1a"], p["w1c"]
    w2a, w2c = p["w2a"], p["w2c"]
    ni, hidden = w1a.shape
    na = w2a.shape[1]
    H2, A2 = 2 * hidden, 2 * na
    W = width
    assert H2 <= W and A2 + 1 <= W, "packing assumes 2*hidden <= 128 and 2*actions+1 <= 128"

    _, r_w2, r_s, r_b1, r_b2, rows = _slab_layout(ni, W)
    slab = jnp.zeros((rows, W), jnp.float32)
    # layer 1: actor cols [0:H), critic cols [H:2H)
    slab = slab.at[:ni, :hidden].set(w1a)
    slab = slab.at[:ni, hidden:H2].set(w1c)
    # layer 2: actor rows [0:H) -> cols [0:na); critic rows [H:2H) -> cols [na:2na)
    slab = slab.at[r_w2:r_w2 + hidden, :na].set(w2a)
    slab = slab.at[r_w2 + hidden:r_w2 + H2, na:A2].set(w2c)
    # lane-shift permutation: column j picks lane na+j  (q_aligned[:, j] = z[:, na+j])
    shift = jnp.zeros((W, W), jnp.float32).at[na + jnp.arange(na), jnp.arange(na)].set(1.0)
    slab = slab.at[r_s:r_s + W, :].set(shift)
    # biases (8-aligned rows)
    slab = slab.at[r_b1, :hidden].set(p["b1a"][0])
    slab = slab.at[r_b1, hidden:H2].set(p["b1c"][0])
    slab = slab.at[r_b2, :na].set(p["b2a"][0])
    slab = slab.at[r_b2, na:A2].set(p["b2c"][0])
    return slab


def actor_critic_forward(x, packed, num_actions, *, block_b=4096):
    """x: [B, num_inputs] f32, packed: slab from pack_params. Returns (policy, q, value)."""
    B, ni = x.shape
    W = packed.shape[1]
    na = num_actions
    A2 = 2 * na
    _, r_w2, r_s, r_b1, r_b2, rows = _slab_layout(ni, W)
    assert packed.shape[0] == rows

    # batch tile: multiple of 8 sublanes; clamp so double-buffered tiles + temporaries stay
    # inside the default 32 MiB scoped VMEM (safe on v5e/v6e and on v7x's 64 MiB part)
    bytes_per_row = (2 * (ni + W) + 8 * W) * 4
    max_tb = max(8, (28 * 1024 * 1024 // bytes_per_row) // 8 * 8)
    tb = min(_round_up(max(B, 1), 8), block_b, max_tb)
    # ensure >=2 grid steps when possible so the parallel batch axis feeds both TCs on v7x
    if B > 8 and _round_up(B, tb) // tb < 2:
        tb = _round_up((B + 1) // 2, 8)
    Bp = _round_up(B, tb)
    if Bp != B:
        x = jnp.pad(x, ((0, Bp - B), (0, 0)))

    kernel = functools.partial(actor_critic_kernel, ni=ni, na=na,
                               r_w2=r_w2, r_s=r_s, r_b1=r_b1, r_b2=r_b2)
    cost = pl.CostEstimate(
        flops=2 * Bp * W * (ni + 2 * W),
        transcendentals=2 * Bp * W,
        bytes_accessed=(Bp * (ni + W) + int(packed.size)) * 4,
    )
    out = pl.pallas_call(
        kernel,
        out_shape=jax.ShapeDtypeStruct((Bp, W), jnp.float32),
        grid=(Bp // tb,),
        in_specs=[
            pl.BlockSpec((tb, ni), lambda i: (i, 0)),        # batch-tiled activations
            pl.BlockSpec((rows, W), lambda i: (0, 0)),       # params resident across grid
        ],
        out_specs=pl.BlockSpec((tb, W), lambda i: (i, 0)),   # lane-dense 128-wide store
        compiler_params=pltpu.CompilerParams(
            dimension_semantics=("parallel",)),              # shard batch across TCs (v7x)
        cost_estimate=cost,
    )(x, packed)

    policy = out[:B, :na]
    q_value = out[:B, na:A2]
    value = out[:B, A2:A2 + 1]
    return policy, q_value, value


# ----------------------------------------------------------------------------- params / reference
def init_params(key, num_inputs, num_actions, hidden_size=NN_SIZE):
    """Deterministic synthetic parameters (PyTorch-Linear-like uniform init)."""
    ks = jax.random.split(key, 8)

    def lin(kw, kb, fan_in, fan_out):
        bound = 1.0 / jnp.sqrt(jnp.float32(fan_in))
        w = jax.random.uniform(kw, (fan_in, fan_out), jnp.float32, -bound, bound)
        b = jax.random.uniform(kb, (1, fan_out), jnp.float32, -bound, bound)
        return w, b

    w1a, b1a = lin(ks[0], ks[1], num_inputs, hidden_size)
    w2a, b2a = lin(ks[2], ks[3], hidden_size, num_actions)
    w1c, b1c = lin(ks[4], ks[5], num_inputs, hidden_size)
    w2c, b2c = lin(ks[6], ks[7], hidden_size, num_actions)
    return dict(w1a=w1a, b1a=b1a, w2a=w2a, b2a=b2a,
                w1c=w1c, b1c=b1c, w2c=w2c, b2c=b2c)


def reference_forward(x, p):
    """Pure-JAX reference matching the PyTorch forward."""
    h_a = jnp.tanh(x @ p["w1a"] + p["b1a"])
    policy = jax.nn.softmax(h_a @ p["w2a"] + p["b2a"], axis=1)
    policy = jnp.minimum(policy, jnp.float32(1.0 - 1e-20))  # no-op in f32
    h_c = jnp.tanh(x @ p["w1c"] + p["b1c"])
    q = h_c @ p["w2c"] + p["b2c"]
    value = jnp.sum(policy * q, axis=-1, keepdims=True)
    return policy, q, value


# ----------------------------------------------------------------------------- main
if __name__ == "__main__":
    num_inputs, num_actions, batch = 16, 6, 4

    key = jax.random.PRNGKey(0)
    k_x, k_p = jax.random.split(key)
    x = jax.random.normal(k_x, (batch, num_inputs), jnp.float32)
    params = init_params(k_p, num_inputs, num_actions)
    packed = pack_params(params)

    policy, q_value, value = jax.block_until_ready(
        actor_critic_forward(x, packed, num_actions))

    ref_policy, ref_q, ref_value = reference_forward(x, params)
    assert policy.shape == (batch, num_actions)
    assert q_value.shape == (batch, num_actions)
    assert value.shape == (batch, 1)
    assert jnp.allclose(policy, ref_policy, atol=1e-5, rtol=1e-5)
    assert jnp.allclose(q_value, ref_q, atol=1e-5, rtol=1e-5)
    assert jnp.allclose(value, ref_value, atol=1e-5, rtol=1e-5)

    print("KERNEL_OK")
</pallas_src>

<mosaic_0001>
module attributes {stable_mosaic.version = 11 : i64} {
  func.func @actor_critic_kernel(%arg0: i32, %arg1: memref<8x16xf32, #tpu.memory_space<vmem>>, %arg2: memref<288x128xf32, #tpu.memory_space<vmem>>, %arg3: memref<8x128xf32, #tpu.memory_space<vmem>>) attributes {dimension_semantics = [#tpu.dimension_semantics<parallel>], iteration_bounds = array<i64: 1>, scalar_prefetch = 0 : i64, scratch_operands = 0 : i64, tpu.core_type = #tpu.core_type<tc>, window_params = [{transform_indices = @transform_0, window_bounds = array<i64: 8, 16>}, {pipeline_mode = #tpu.pipeline_mode<synchronous>, transform_indices = @transform_1, window_bounds = array<i64: 288, 128>}, {transform_indices = @transform_2, window_bounds = array<i64: 8, 128>}]} {
    %c0 = arith.constant 0 : index
    %c0_0 = arith.constant 0 : index
    %0 = vector.load %arg1[%c0, %c0_0] : memref<8x16xf32, #tpu.memory_space<vmem>>, vector<8x16xf32>
    %c0_1 = arith.constant 0 : index
    %c0_2 = arith.constant 0 : index
    %1 = vector.load %arg2[%c0_1, %c0_2] : memref<288x128xf32, #tpu.memory_space<vmem>>, vector<16x128xf32>
    %c16 = arith.constant 16 : index
    %c0_3 = arith.constant 0 : index
    %2 = vector.load %arg2[%c16, %c0_3] : memref<288x128xf32, #tpu.memory_space<vmem>>, vector<128x128xf32>
    %c144 = arith.constant 144 : index
    %c0_4 = arith.constant 0 : index
    %3 = vector.load %arg2[%c144, %c0_4] : memref<288x128xf32, #tpu.memory_space<vmem>>, vector<128x128xf32>
    %c272 = arith.constant 272 : index
    %c0_5 = arith.constant 0 : index
    %4 = vector.load %arg2[%c272, %c0_5] : memref<288x128xf32, #tpu.memory_space<vmem>>, vector<1x128xf32>
    %c280 = arith.constant 280 : index
    %c0_6 = arith.constant 0 : index
    %5 = vector.load %arg2[%c280, %c0_6] : memref<288x128xf32, #tpu.memory_space<vmem>>, vector<1x128xf32>
    %cst = arith.constant dense<0.000000e+00> : vector<8x128xf32>
    %6 = tpu.matmul %0, %1, %cst {dimension_numbers = #tpu.dot_dimension_numbers<[1], [0], [0], [1], [0, 0, 1, 1], [], []>} : vector<8x16xf32>, vector<16x128xf32>, vector<8x128xf32> -> vector<8x128xf32>
    %7 = vector.broadcast %4 : vector<1x128xf32> to vector<8x128xf32>
    %8 = arith.addf %6, %7 : vector<8x128xf32>
    %9 = math.tanh %8 : vector<8x128xf32>
    %cst_7 = arith.constant dense<0.000000e+00> : vector<8x128xf32>
    %10 = tpu.matmul %9, %2, %cst_7 {dimension_numbers = #tpu.dot_dimension_numbers<[1], [0], [0], [1], [0, 0, 1, 1], [], []>} : vector<8x128xf32>, vector<128x128xf32>, vector<8x128xf32> -> vector<8x128xf32>
    %11 = vector.broadcast %5 : vector<1x128xf32> to vector<8x128xf32>
    %12 = arith.addf %10, %11 : vector<8x128xf32>
    %13 = tpu.iota {dimensions = array<i32: 1>} : vector<8x128xi32>
    %c6_i32 = arith.constant 6 : i32
    %14 = vector.broadcast %c6_i32 : i32 to vector<8x128xi32>
    %15 = arith.cmpi slt, %13, %14 : vector<8x128xi32>
    %cst_8 = arith.constant -1.000000e+30 : f32
    %16 = vector.broadcast %cst_8 : f32 to vector<8x128xf32>
    %17 = arith.select %15, %12, %16 : vector<8x128xi1>, vector<8x128xf32>
    %cst_9 = arith.constant dense<0xFF800000> : vector<8xf32>
    %18 = vector.multi_reduction <maximumf>, %17, %cst_9 [1] : vector<8x128xf32> to vector<8xf32>
    %19 = vector.shape_cast %18 : vector<8xf32> to vector<8x1xf32>
    %20 = vector.broadcast %19 : vector<8x1xf32> to vector<8x128xf32>
    %21 = arith.subf %12, %20 : vector<8x128xf32>
    %cst_10 = arith.constant -1.000000e+30 : f32
    %22 = vector.broadcast %cst_10 : f32 to vector<8x128xf32>
    %23 = arith.select %15, %21, %22 : vector<8x128xi1>, vector<8x128xf32>
    %24 = math.exp %23 : vector<8x128xf32>
    %cst_11 = arith.constant dense<0.000000e+00> : vector<8xf32>
    %25 = vector.multi_reduction <add>, %24, %cst_11 [1] : vector<8x128xf32> to vector<8xf32>
    %26 = vector.shape_cast %25 : vector<8xf32> to vector<8x1xf32>
    %27 = tpu.reciprocal %26 : vector<8x1xf32> -> vector<8x1xf32>
    %28 = vector.broadcast %27 : vector<8x1xf32> to vector<8x128xf32>
    %29 = arith.mulf %24, %28 : vector<8x128xf32>
    %cst_12 = arith.constant dense<0.000000e+00> : vector<8x128xf32>
    %30 = tpu.matmul %12, %3, %cst_12 {dimension_numbers = #tpu.dot_dimension_numbers<[1], [0], [0], [1], [0, 0, 1, 1], [], []>} : vector<8x128xf32>, vector<128x128xf32>, vector<8x128xf32> -> vector<8x128xf32>
    %31 = arith.mulf %29, %30 : vector<8x128xf32>
    %cst_13 = arith.constant dense<0.000000e+00> : vector<8xf32>
    %32 = vector.multi_reduction <add>, %31, %cst_13 [1] : vector<8x128xf32> to vector<8xf32>
    %33 = vector.shape_cast %32 : vector<8xf32> to vector<8x1xf32>
    %34 = arith.select %15, %29, %12 : vector<8x128xi1>, vector<8x128xf32>
    %c12_i32 = arith.constant 12 : i32
    %35 = vector.broadcast %c12_i32 : i32 to vector<8x128xi32>
    %36 = arith.cmpi eq, %13, %35 : vector<8x128xi32>
    %37 = vector.shape_cast %33 : vector<8x1xf32> to vector<8x1xf32>
    %38 = vector.broadcast %37 : vector<8x1xf32> to vector<8x128xf32>
    %39 = arith.select %36, %38, %34 : vector<8x128xi1>, vector<8x128xf32>
    %c0_14 = arith.constant 0 : index
    %c0_15 = arith.constant 0 : index
    %40 = vector.load %arg3[%c0_14, %c0_15] : memref<8x128xf32, #tpu.memory_space<vmem>>, vector<8x128xf32>
    tpu.vector_store %arg3[%c0_14, %c0_15], %39 {strides = array<i32>} : memref<8x128xf32, #tpu.memory_space<vmem>>, vector<8x128xf32>,
    return
  }
  func.func @transform_0(%arg0: i32) -> (i32, i32) {
    %c0_i32 = arith.constant 0 : i32
    %c0_i32_0 = arith.constant 0 : i32
    return %arg0, %c0_i32 : i32, i32
  }
  func.func @transform_1(%arg0: i32) -> (i32, i32) {
    %c0_i32 = arith.constant 0 : i32
    %c0_i32_0 = arith.constant 0 : i32
    %c0_i32_1 = arith.constant 0 : i32
    return %c0_i32, %c0_i32_0 : i32, i32
  }
  func.func @transform_2(%arg0: i32) -> (i32, i32) {
    %c0_i32 = arith.constant 0 : i32
    %c0_i32_0 = arith.constant 0 : i32
    return %arg0, %c0_i32 : i32, i32
  }
}

</mosaic_0001>

<llo_original>
// kernel: tpu_custom_call.1
$region0: #{tpu_custom_call.1}
  #allocation0 [shape = 'u32[]', space=smem, size = 0x4, offset = 0x4, fixed_abs, tag = 'smem constant byte address 0x4 - core index']
  #allocation1 [shape = 'u32[144,128]{1,0:T(1,128)}', space=vmem, size = 0x12000, scoped, tag = 'internal scratch']
  %s0 = inlined_call_operand.hbm [shape: f32[8,16], index: 0, kind: input, shape index: {}]
  %s1 = inlined_call_operand.hbm [shape: f32[288,128], index: 1, kind: input, shape index: {}]
  %s2 = inlined_call_operand.hbm [shape: f32[8,128], index: 2, kind: output, shape index: {}]
  %s3 = sld [smem:[#allocation0]]
  $region26: #{tpu_custom_call.1} parent=0
    _
  %s5 = ssub.s32 1, %s3
  %s6 = scalar_select 0, %s5, %s3
  $region1: #{tpu_custom_call.1} parent=0
    #allocation2 [shape = 'u8[4096]{0}', space=vmem, size = 0x1000, scoped, tag = 'input window, operand 0, single buffered']
    #allocation3 [shape = 's32[1]{0}', space=sflag, size = 0x4, scoped, tag = 'scoped memory for tpu_custom_call.1']
    #allocation4 [shape = 's32[1]{0}', space=sflag, size = 0x4, scoped, tag = 'scoped memory for tpu_custom_call.1']
    #allocation5 [shape = 'u8[147456]{0}', space=vmem, size = 0x24000, scoped, tag = 'input window, operand 1, single buffered']
    #allocation6 [shape = 's32[1]{0}', space=sflag, size = 0x4, scoped, tag = 'scoped memory for tpu_custom_call.1']
    #allocation7 [shape = 'u8[4096]{0}', space=vmem, size = 0x1000, scoped, tag = 'output window, operand 0, single buffered']
    %7 = vsyncpa [#allocation3], 0
    %8 = vsyncpa [#allocation6], 0
    %9 = vsyncpa [#allocation4], 0
    // Predicated region
    $region2: #{tpu_custom_call.1} parent=1 // pred_check
      _
    $region3: #{tpu_custom_call.1} parent=1 // pred_check_branch
      %11 = sbr.rel (0) target = $region5
    $region4: #{tpu_custom_call.1} parent=1 // pred_region
      %s13 = ssub.s32 128, 128
      %14 = vsyncadd [#allocation3], %s13
      %s16 = sshll.u32 [#allocation2], 4
      %s17 = int_to_ptr.vmem [resolvable:$true] %s16
      %19 = dma.hbm_to_vmem [thread:$0]  %s0, 128, %s17, [#allocation3]
    $region5: #{tpu_custom_call.1} parent=1 // pred_fallthru
      _
    // Predicated region
    $region6: #{tpu_custom_call.1} parent=1 // pred_check
      _
    $region7: #{tpu_custom_call.1} parent=1 // pred_check_branch
      %21 = sbr.rel (0) target = $region9
    $region8: #{tpu_custom_call.1} parent=1 // pred_region
      %s23 = ssub.s32 4608, 4608
      %24 = vsyncadd [#allocation6], %s23
      %s25 = sshll.u32 [#allocation5], 4
      %s26 = int_to_ptr.vmem [resolvable:$true] %s25
      %31 = dma.hbm_to_vmem [thread:$0]  %s1, 4608, %s26, [#allocation6], 128, 128, 8
    $region9: #{tpu_custom_call.1} parent=1 // pred_fallthru
      _
    // Predicated region
    $region10: #{tpu_custom_call.1} parent=1 // pred_check
      _
    $region11: #{tpu_custom_call.1} parent=1 // pred_check_branch
      %33 = sbr.rel (0) target = $region13
    $region12: #{tpu_custom_call.1} parent=1 // pred_region
      %34 = dma.done [#allocation3], 128
    $region13: #{tpu_custom_call.1} parent=1 // pred_fallthru
      _
    // Predicated region
    $region14: #{tpu_custom_call.1} parent=1 // pred_check
      _
    $region15: #{tpu_custom_call.1} parent=1 // pred_check_branch
      %36 = sbr.rel (0) target = $region17
    $region16: #{tpu_custom_call.1} parent=1 // pred_region
      %37 = dma.done [#allocation6], 4608
    $region17: #{tpu_custom_call.1} parent=1 // pred_fallthru
      _
    %v38 = vld [vmem:[#allocation2] sm:$0xff]
    %v39 = vld [vmem:[#allocation5] sm:$0xff]
    %v40 = vld [vmem:[#allocation5 + $0x8] sm:$0xff]
    %v41 = vld [vmem:[#allocation5 + $0x10] sm:$0xff]
    %v42 = vld [vmem:[#allocation5 + $0x18] sm:$0xff]
    %v43 = vld [vmem:[#allocation5 + $0x20] sm:$0xff]
    %v44 = vld [vmem:[#allocation5 + $0x28] sm:$0xff]
    %v45 = vld [vmem:[#allocation5 + $0x30] sm:$0xff]
    %v46 = vld [vmem:[#allocation5 + $0x38] sm:$0xff]
    %v47 = vld [vmem:[#allocation5 + $0x40] sm:$0xff]
    %v48 = vld [vmem:[#allocation5 + $0x48] sm:$0xff]
    %v49 = vld [vmem:[#allocation5 + $0x50] sm:$0xff]
    %v50 = vld [vmem:[#allocation5 + $0x58] sm:$0xff]
    %v51 = vld [vmem:[#allocation5 + $0x60] sm:$0xff]
    %v52 = vld [vmem:[#allocation5 + $0x68] sm:$0xff]
    %v53 = vld [vmem:[#allocation5 + $0x70] sm:$0xff]
    %v54 = vld [vmem:[#allocation5 + $0x78] sm:$0xff]
    %v55 = vld [vmem:[#allocation5 + $0x80] sm:$0xff]
    %v56 = vld [vmem:[#allocation5 + $0x88] sm:$0xff]
    %v57 = vld [vmem:[#allocation5 + $0x90] sm:$0xff]
    %v58 = vld [vmem:[#allocation5 + $0x98] sm:$0xff]
    %v59 = vld [vmem:[#allocation5 + $0xa0] sm:$0xff]
    %v60 = vld [vmem:[#allocation5 + $0xa8] sm:$0xff]
    %v61 = vld [vmem:[#allocation5 + $0xb0] sm:$0xff]
    %v62 = vld [vmem:[#allocation5 + $0xb8] sm:$0xff]
    %v63 = vld [vmem:[#allocation5 + $0xc0] sm:$0xff]
    %v64 = vld [vmem:[#allocation5 + $0xc8] sm:$0xff]
    %v65 = vld [vmem:[#allocation5 + $0xd0] sm:$0xff]
    %v66 = vld [vmem:[#allocation5 + $0xd8] sm:$0xff]
    %v67 = vld [vmem:[#allocation5 + $0xe0] sm:$0xff]
    %v68 = vld [vmem:[#allocation5 + $0xe8] sm:$0xff]
    %v69 = vld [vmem:[#allocation5 + $0xf0] sm:$0xff]
    %v70 = vld [vmem:[#allocation5 + $0xf8] sm:$0xff]
    %v71 = vld [vmem:[#allocation5 + $0x100] sm:$0xff]
    %v72 = vld [vmem:[#allocation5 + $0x108] sm:$0xff]
    %v73 = vld [vmem:[#allocation5 + $0x110] sm:$0x1]
    %v74 = vld [vmem:[#allocation5 + $0x118] sm:$0x1]
    %v75 = vlaneseq
    %v76 = vshrl.u32 %v75, 7
    %v77 = vsub.s32 0, %v76
    %v78 = vrot.slane %v73, %v77
    %vm79 = vcmask 130048
    %v81 = vsel %vm79, %v38, 0
    %83 = vmatprep.subr.mxu0 0.0
    %84 = vmatpush1.msra.mxu0 %v39
    %85 = vmatprep.subr.mxu0 0.0
    %86 = vmatpush1.msra.mxu0 %v40
    %87 = vmatprep.subr.mxu0 0.0
    %88 = vmatpush1.msra.mxu0 0.0
    %89 = vmatprep.subr.mxu0 0.0
    %90 = vmatpush1.msra.mxu0 0.0
    %91 = vmatprep.subr.mxu0 0.0
    %92 = vmatpush1.msra.mxu0 0.0
    %93 = vmatprep.subr.mxu0 0.0
    %94 = vmatpush1.msra.mxu0 0.0
    %95 = vmatprep.subr.mxu0 0.0
    %96 = vmatpush1.msra.mxu0 0.0
    %97 = vmatprep.subr.mxu0 0.0
    %98 = vmatpush1.msra.mxu0 0.0
    %99 = vmatprep.subr.mxu0 0.0
    %100 = vmatpush1.msra.mxu0 0.0
    %101 = vmatprep.subr.mxu0 0.0
    %102 = vmatpush1.msra.mxu0 0.0
    %103 = vmatprep.subr.mxu0 0.0
    %104 = vmatpush1.msra.mxu0 0.0
    %105 = vmatprep.subr.mxu0 0.0
    %106 = vmatpush1.msra.mxu0 0.0
    %107 = vmatprep.subr.mxu0 0.0
    %108 = vmatpush1.msra.mxu0 0.0
    %109 = vmatprep.subr.mxu0 0.0
    %110 = vmatpush1.msra.mxu0 0.0
    %111 = vmatprep.subr.mxu0 0.0
    %112 = vmatpush1.msra.mxu0 0.0
    %113 = vmatprep.subr.mxu0 0.0
    %114 = vmatpush1.msra.mxu0 0.0
    %115 = vmatprep.subr.mxu0 0.0
    %116 = vmatpush1.msra.mxu0 0.0
    %117 = vmatprep.subr.mxu0 0.0
    %118 = vmatpush1.msra.mxu0 0.0
    %119 = vmatprep.subr.mxu0 0.0
    %120 = vmatpush1.msra.mxu0 0.0
    %121 = vmatprep.subr.mxu0 0.0
    %122 = vmatpush1.msra.mxu0 0.0
    %123 = vmatprep.subr.mxu0 0.0
    %124 = vmatpush1.msra.mxu0 0.0
    %125 = vmatprep.subr.mxu0 0.0
    %126 = vmatpush1.msra.mxu0 0.0
    %127 = vmatprep.subr.mxu0 0.0
    %128 = vmatpush1.msra.mxu0 0.0
    %129 = vmatprep.subr.mxu0 0.0
    %130 = vmatpush1.msra.mxu0 0.0
    %131 = vmatprep.subr.mxu0 0.0
    %132 = vmatpush1.msra.mxu0 0.0
    %133 = vmatprep.subr.mxu0 0.0
    %134 = vmatpush1.msra.mxu0 0.0
    %135 = vmatprep.subr.mxu0 0.0
    %136 = vmatpush1.msra.mxu0 0.0
    %137 = vmatprep.subr.mxu0 0.0
    %138 = vmatpush1.msra.mxu0 0.0
    %139 = vmatprep.subr.mxu0 0.0
    %140 = vmatpush1.msra.mxu0 0.0
    %141 = vmatprep.subr.mxu0 0.0
    %142 = vmatpush1.msra.mxu0 0.0
    %143 = vmatprep.subr.mxu0 0.0
    %144 = vmatpush1.msra.mxu0 0.0
    %145 = vmatprep.subr.mxu0 0.0
    %146 = vmatpush1.msra.mxu0 0.0
    %147 = vmatprep.mubr.f32.mxu0 0.0
    %148 = vmatmul.mubr.f32.gmra.mrb[0].mxu0 %v81
    %v149 = vpop.f32.mrb[0].mxu0
    %v150 = vadd.f32 %v78, %v149
    %v151 = vpop.f32.mrb[0].mxu0
    %152 = vdwg.mxu0
    %v153 = vtanh.pop %v150
    %v154 = vlaneseq
    %v155 = vshrl.u32 %v154, 7
    %v156 = vsub.s32 0, %v155
    %v157 = vrot.slane %v74, %v156
    %158 = vmatprep.subr.mxu0 0.0
    %159 = vmatpush1.msra.mxu0 %v41
    %160 = vmatprep.subr.mxu0 0.0
    %161 = vmatpush1.msra.mxu0 %v42
    %162 = vmatprep.subr.mxu0 0.0
    %163 = vmatpush1.msra.mxu0 %v43
    %164 = vmatprep.subr.mxu0 0.0
    %165 = vmatpush1.msra.mxu0 %v44
    %166 = vmatprep.subr.mxu0 0.0
    %167 = vmatpush1.msra.mxu0 %v45
    %168 = vmatprep.subr.mxu0 0.0
    %169 = vmatpush1.msra.mxu0 %v46
    %170 = vmatprep.subr.mxu0 0.0
    %171 = vmatpush1.msra.mxu0 %v47
    %172 = vmatprep.subr.mxu0 0.0
    %173 = vmatpush1.msra.mxu0 %v48
    %174 = vmatprep.subr.mxu0 0.0
    %175 = vmatpush1.msra.mxu0 %v49
    %176 = vmatprep.subr.mxu0 0.0
    %177 = vmatpush1.msra.mxu0 %v50
    %178 = vmatprep.subr.mxu0 0.0
    %179 = vmatpush1.msra.mxu0 %v51
    %180 = vmatprep.subr.mxu0 0.0
    %181 = vmatpush1.msra.mxu0 %v52
    %182 = vmatprep.subr.mxu0 0.0
    %183 = vmatpush1.msra.mxu0 %v53
    %184 = vmatprep.subr.mxu0 0.0
    %185 = vmatpush1.msra.mxu0 %v54
    %186 = vmatprep.subr.mxu0 0.0
    %187 = vmatpush1.msra.mxu0 %v55
    %188 = vmatprep.subr.mxu0 0.0
    %189 = vmatpush1.msra.mxu0 %v56
    %190 = vmatprep.subr.mxu0 0.0
    %191 = vmatpush1.msra.mxu0 0.0
    %192 = vmatprep.subr.mxu0 0.0
    %193 = vmatpush1.msra.mxu0 0.0
    %194 = vmatprep.subr.mxu0 0.0
    %195 = vmatpush1.msra.mxu0 0.0
    %196 = vmatprep.subr.mxu0 0.0
    %197 = vmatpush1.msra.mxu0 0.0
    %198 = vmatprep.subr.mxu0 0.0
    %199 = vmatpush1.msra.mxu0 0.0
    %200 = vmatprep.subr.mxu0 0.0
    %201 = vmatpush1.msra.mxu0 0.0
    %202 = vmatprep.subr.mxu0 0.0
    %203 = vmatpush1.msra.mxu0 0.0
    %204 = vmatprep.subr.mxu0 0.0
    %205 = vmatpush1.msra.mxu0 0.0
    %206 = vmatprep.subr.mxu0 0.0
    %207 = vmatpush1.msra.mxu0 0.0
    %208 = vmatprep.subr.mxu0 0.0
    %209 = vmatpush1.msra.mxu0 0.0
    %210 = vmatprep.subr.mxu0 0.0
    %211 = vmatpush1.msra.mxu0 0.0
    %212 = vmatprep.subr.mxu0 0.0
    %213 = vmatpush1.msra.mxu0 0.0
    %214 = vmatprep.subr.mxu0 0.0
    %215 = vmatpush1.msra.mxu0 0.0
    %216 = vmatprep.subr.mxu0 0.0
    %217 = vmatpush1.msra.mxu0 0.0
    %218 = vmatprep.subr.mxu0 0.0
    %219 = vmatpush1.msra.mxu0 0.0
    %220 = vmatprep.subr.mxu0 0.0
    %221 = vmatpush1.msra.mxu0 0.0
    %222 = vmatprep.mubr.f32.mxu0 0.0
    %223 = vmatmul.mubr.f32.gmra.mrb[0].mxu0 %v153
    %v224 = vpop.f32.mrb[0].mxu0
    %v225 = vadd.f32 %v157, %v224
    %v226 = vpop.f32.mrb[0].mxu0
    %227 = vdwg.mxu0
    %v228 = vlaneseq
    %v229 = vand.u32 %v228, 127
    %vm230 = vcmp.lt.s32.totalorder %v229, 6
    %v231 = vsel %vm230, %v225, -1e+30
    %232 = vmax.xlane.f32.xlu0 %v231
    %v233 = vpop.xlane.xlu0 %232
    %v234 = vsub.f32 %v225, %v233
    %v235 = vsel %vm230, %v234, -1e+30
    %v236 = vmul.f32 %v235, 1.442695
    %v237 = vpow.pop %v236
    %238 = vadd.xlane.f32.xlu0 %v237
    %v239 = vpop.xlane.xlu0 %238
    %v240 = vrcp.pop %v239
    %v241 = vmul.f32 %v237, %v240
    %242 = vmatprep.subr.mxu0 0.0
    %243 = vmatpush1.msra.mxu0 %v57
    %244 = vmatprep.subr.mxu0 0.0
    %245 = vmatpush1.msra.mxu0 %v58
    %246 = vmatprep.subr.mxu0 0.0
    %247 = vmatpush1.msra.mxu0 %v59
    %248 = vmatprep.subr.mxu0 0.0
    %249 = vmatpush1.msra.mxu0 %v60
    %250 = vmatprep.subr.mxu0 0.0
    %251 = vmatpush1.msra.mxu0 %v61
    %252 = vmatprep.subr.mxu0 0.0
    %253 = vmatpush1.msra.mxu0 %v62
    %254 = vmatprep.subr.mxu0 0.0
    %255 = vmatpush1.msra.mxu0 %v63
    %256 = vmatprep.subr.mxu0 0.0
    %257 = vmatpush1.msra.mxu0 %v64
    %258 = vmatprep.subr.mxu0 0.0
    %259 = vmatpush1.msra.mxu0 %v65
    %260 = vmatprep.subr.mxu0 0.0
    %261 = vmatpush1.msra.mxu0 %v66
    %262 = vmatprep.subr.mxu0 0.0
    %263 = vmatpush1.msra.mxu0 %v67
    %264 = vmatprep.subr.mxu0 0.0
    %265 = vmatpush1.msra.mxu0 %v68
    %266 = vmatprep.subr.mxu0 0.0
    %267 = vmatpush1.msra.mxu0 %v69
    %268 = vmatprep.subr.mxu0 0.0
    %269 = vmatpush1.msra.mxu0 %v70
    %270 = vmatprep.subr.mxu0 0.0
    %271 = vmatpush1.msra.mxu0 %v71
    %272 = vmatprep.subr.mxu0 0.0
    %273 = vmatpush1.msra.mxu0 %v72
    %274 = vmatprep.subr.mxu0 0.0
    %275 = vmatpush1.msra.mxu0 0.0
    %276 = vmatprep.subr.mxu0 0.0
    %277 = vmatpush1.msra.mxu0 0.0
    %278 = vmatprep.subr.mxu0 0.0
    %279 = vmatpush1.msra.mxu0 0.0
    %280 = vmatprep.subr.mxu0 0.0
    %281 = vmatpush1.msra.mxu0 0.0
    %282 = vmatprep.subr.mxu0 0.0
    %283 = vmatpush1.msra.mxu0 0.0
    %284 = vmatprep.subr.mxu0 0.0
    %285 = vmatpush1.msra.mxu0 0.0
    %286 = vmatprep.subr.mxu0 0.0
    %287 = vmatpush1.msra.mxu0 0.0
    %288 = vmatprep.subr.mxu0 0.0
    %289 = vmatpush1.msra.mxu0 0.0
    %290 = vmatprep.subr.mxu0 0.0
    %291 = vmatpush1.msra.mxu0 0.0
    %292 = vmatprep.subr.mxu0 0.0
    %293 = vmatpush1.msra.mxu0 0.0
    %294 = vmatprep.subr.mxu0 0.0
    %295 = vmatpush1.msra.mxu0 0.0
    %296 = vmatprep.subr.mxu0 0.0
    %297 = vmatpush1.msra.mxu0 0.0
    %298 = vmatprep.subr.mxu0 0.0
    %299 = vmatpush1.msra.mxu0 0.0
    %300 = vmatprep.subr.mxu0 0.0
    %301 = vmatpush1.msra.mxu0 0.0
    %302 = vmatprep.subr.mxu0 0.0
    %303 = vmatpush1.msra.mxu0 0.0
    %304 = vmatprep.subr.mxu0 0.0
    %305 = vmatpush1.msra.mxu0 0.0
    %306 = vmatprep.mubr.f32.mxu0 0.0
    %307 = vmatmul.mubr.f32.gmra.mrb[0].mxu0 %v225
    %v308 = vpop.f32.mrb[0].mxu0
    %v309 = vadd.f32 0.0, %v308
    %v310 = vpop.f32.mrb[0].mxu0
    %311 = vdwg.mxu0
    %v312 = vmul.f32 %v241, %v309
    %313 = vadd.xlane.f32.xlu0 %v312
    %v314 = vpop.xlane.xlu0 %313
    %v315 = vsel %vm230, %v241, %v225
    %vm316 = vcmp.eq.s32.totalorder %v229, 12
    %v317 = vsel %vm316, %v314, %v315
    %318 = vst [vmem:[#allocation7] sm:$0xff] %v317
    // Predicated region
    $region18: #{tpu_custom_call.1} parent=1 // pred_check
      _
    $region19: #{tpu_custom_call.1} parent=1 // pred_check_branch
      %320 = sbr.rel (0) target = $region21
    $region20: #{tpu_custom_call.1} parent=1 // pred_region
      %s322 = ssub.s32 128, 128
      %323 = vsyncadd [#allocation4], %s322
      %s325 = sshll.u32 [#allocation7], 4
      %s326 = int_to_ptr.vmem [resolvable:$true] %s325
      %328 = dma.vmem_to_hbm [thread:$0]  %s326, 128, %s2, [#allocation4]
    $region21: #{tpu_custom_call.1} parent=1 // pred_fallthru
      _
    // Predicated region
    $region22: #{tpu_custom_call.1} parent=1 // pred_check
      _
    $region23: #{tpu_custom_call.1} parent=1 // pred_check_branch
      %330 = sbr.rel (0) target = $region25
    $region24: #{tpu_custom_call.1} parent=1 // pred_region
      %331 = dma.done [#allocation4], 128
    $region25: #{tpu_custom_call.1} parent=1 // pred_fallthru
      _
    %332 = vsyncpa [#allocation3], 1
    %333 = vsyncpa [#allocation6], 1
    %334 = vsyncpa [#allocation4], 1

</llo_original>
